<compile_context>
chip_gen: v6e
topology: v6e:2x2x1
jax: 0.10.0
libtpu: 0.0.40
codegen_flags: <defaults>
</compile_context>

<pallas_src>
import jax
import jax.numpy as jnp
from jax.experimental import pallas as pl
from jax.experimental.pallas import tpu as pltpu


def _round_up(v, m):
    return ((v + m - 1) // m) * m


def _suffix_exclusive_cumprod(a):
    """res[..., k] = prod_{j > k} a[..., j]  (exclusive suffix product, last axis)."""
    rev = jnp.flip(a, axis=-1)
    inc = jnp.cumprod(rev, axis=-1)
    exc = jnp.concatenate([jnp.ones_like(a[..., :1]), inc[..., :-1]], axis=-1)
    return jnp.flip(exc, axis=-1)


def _tpu_defaults():
    """(tn_pref, tout_pref, vmem_limit_bytes) per TPU generation."""
    try:
        kind = jax.devices()[0].device_kind.lower()
    except Exception:
        kind = ""
    if "v5" in kind:      # 128x128 MXU, lowest HBM BW -> tall N tiles, 128-wide OUT
        return 512, 128, 100 * 1024 * 1024
    if "v6" in kind:      # 256-wide MXU, 128 MiB physical VMEM
        return 256, 256, 96 * 1024 * 1024
    if "v7" in kind:      # 256-wide MXU, only 64 MiB VMEM per TensorCore
        return 256, 256, 48 * 1024 * 1024
    return 256, 256, 64 * 1024 * 1024


# ---------------------------------------------------------------------------
# Kernel: 2 MXU matmuls (compacted AEG + projection) + EUP sigmoid + VPU gate.
# One grid point handles one (N-tile, parity-half, OUT-half-tile).
# ---------------------------------------------------------------------------
def _semilinear_kernel(xp_ref, x_ref, wa_ref, pw_ref, pb_ref, o_ref):
    # xp : (TN, Fp)   parity-scaled activations (xe for even-i half, xo for odd-i half)
    # x  : (TN, Fp)   raw activations
    # wa : (Fp, TOUT) compacted, suffix-cumprod-scaled AEG weights for this half
    # pw : (Fp, TOUT) proj.weight columns for this half
    # pb : (1, TOUT)  proj.bias for this half (f32)
    # o  : (TN, TOUT)
    aeg = jnp.dot(xp_ref[...], wa_ref[...], preferred_element_type=jnp.float32)
    proj = jnp.dot(x_ref[...], pw_ref[...], preferred_element_type=jnp.float32) + pb_ref[...]
    o_ref[...] = (jax.nn.sigmoid(aeg) * proj).astype(o_ref.dtype)


# ---------------------------------------------------------------------------
# Factory: one-time weight prep (cached), returns a jitted apply(x).
# ---------------------------------------------------------------------------
def make_semilinear(weight, proj_w, proj_b, *, compute_dtype=jnp.bfloat16):
    """weight: (OUT, F) AEG weight (PyTorch param is (1,OUT,F): pass weight[0]);
    proj_w: (OUT, F); proj_b: (OUT,).  Returns apply(x) with x: (N, F)."""
    weight = jnp.asarray(weight, jnp.float32)
    proj_w = jnp.asarray(proj_w, jnp.float32)
    proj_b = jnp.asarray(proj_b, jnp.float32)
    out_f, feat = weight.shape

    tn_pref, tout_pref, vmem_limit = _tpu_defaults()
    cd_size = jnp.dtype(compute_dtype).itemsize

    # ---- weight-side prep (runs ONCE, all in f32; cast to compute_dtype at the end) ----
    k_even = (jnp.arange(feat) % 2 == 0)[None, :]
    sw_even = _suffix_exclusive_cumprod(jnp.where(k_even, weight, 1.0))  # prod over even j>k
    sw_odd = _suffix_exclusive_cumprod(jnp.where(k_even, 1.0, weight))   # prod over odd  j>k
    # Parity compaction: even-i rows use the odd-j W suffix product and vice versa.
    wa_even = (weight * sw_odd)[0::2].T    # (F, n_even)
    wa_odd = (weight * sw_even)[1::2].T    # (F, n_odd)
    pw_even = proj_w[0::2].T               # (F, n_even)
    pw_odd = proj_w[1::2].T                # (F, n_odd)
    pb_even = proj_b[0::2]
    pb_odd = proj_b[1::2]

    n_even, n_odd = wa_even.shape[1], wa_odd.shape[1]
    feat_p = _round_up(feat, 8)                                   # K padded with zeros
    tout = min(tout_pref, _round_up(max(n_even, 1), 128))         # lane-dense OUT tiles
    oh_pad = _round_up(max(n_even, 1), tout)

    def _pack(a_even, a_odd, rows, dtype):
        buf = jnp.zeros((2, rows, oh_pad), jnp.float32)
        buf = buf.at[0, : a_even.shape[0], :n_even].set(a_even)
        if n_odd > 0:
            buf = buf.at[1, : a_odd.shape[0], :n_odd].set(a_odd)
        return buf.astype(dtype)

    wa = _pack(wa_even, wa_odd, feat_p, compute_dtype)            # (2, Fp, OHp)
    pw = _pack(pw_even, pw_odd, feat_p, compute_dtype)            # (2, Fp, OHp)
    pb = _pack(pb_even[None, :], pb_odd[None, :], 1, jnp.float32)  # (2, 1,  OHp) f32

    @jax.jit
    def apply(x):
        n, f_in = x.shape
        if f_in != feat:
            raise ValueError(f"expected in_features={feat}, got {f_in}")
        x32 = x.astype(jnp.float32)

        # Activation-side suffix cumprods: cheap O(N*F) elementwise prep, kept in f32.
        ke = (jnp.arange(feat) % 2 == 0)[None, :]
        xe = x32 * _suffix_exclusive_cumprod(jnp.where(ke, x32, 1.0))  # even-i half LHS
        xo = x32 * _suffix_exclusive_cumprod(jnp.where(ke, 1.0, x32))  # odd-i  half LHS

        # N-tile size (static under jit) + crude VMEM guard for whole-F blocks.
        tn = min(tn_pref, _round_up(n, 8))

        def step_bytes(tn_):
            return (2 * (2 * tn_ * feat_p + 2 * feat_p * tout) * cd_size
                    + 2 * tout * 4 + 2 * tn_ * tout * 4)

        while tn > 8 and step_bytes(tn) > 0.6 * vmem_limit:
            tn = max(8, tn // 2)
        n_pad = _round_up(n, tn)

        xp = jnp.stack([xe, xo], axis=0)                           # (2, N, F)
        if n_pad != n or feat_p != feat:                           # skip pads when aligned
            xp = jnp.pad(xp, ((0, 0), (0, n_pad - n), (0, feat_p - feat)))
            xr = jnp.pad(x32, ((0, n_pad - n), (0, feat_p - feat)))
        else:
            xr = x32
        xp = xp.astype(compute_dtype)
        xr = xr.astype(compute_dtype)

        n_i = n_pad // tn
        n_j = oh_pad // tout
        # Grid order: re-fetch whichever of {weights, activations} costs less overall.
        act_bytes = 3 * n_pad * feat_p * cd_size
        wt_bytes = 4 * feat_p * oh_pad * cd_size
        i_outer = n_i * wt_bytes <= n_j * act_bytes
        if i_outer:
            grid = (2, n_i, n_j)
            xp_map = lambda h, a, b: (h, a, 0)
            x_map = lambda h, a, b: (a, 0)
            w_map = lambda h, a, b: (h, 0, b)
            o_map = lambda h, a, b: (h, a, b)
        else:
            grid = (2, n_j, n_i)
            xp_map = lambda h, a, b: (h, b, 0)
            x_map = lambda h, a, b: (b, 0)
            w_map = lambda h, a, b: (h, 0, a)
            o_map = lambda h, a, b: (h, b, a)

        out_p = pl.pallas_call(
            _semilinear_kernel,
            out_shape=jax.ShapeDtypeStruct((2, n_pad, oh_pad), jnp.float32),
            grid_spec=pltpu.PrefetchScalarGridSpec(
                num_scalar_prefetch=0,
                grid=grid,
                in_specs=[
                    pl.BlockSpec((None, tn, feat_p), xp_map),     # xe / xo (per half)
                    pl.BlockSpec((tn, feat_p), x_map),            # raw x
                    pl.BlockSpec((None, feat_p, tout), w_map),    # compacted AEG weights
                    pl.BlockSpec((None, feat_p, tout), w_map),    # proj weights
                    pl.BlockSpec((None, 1, tout), w_map),         # proj bias
                ],
                out_specs=pl.BlockSpec((None, tn, tout), o_map),
            ),
            compiler_params=pltpu.CompilerParams(
                dimension_semantics=("parallel", "parallel", "parallel"),
                vmem_limit_bytes=vmem_limit,
            ),
        )(xp, xr, wa, pw, pb)

        # Un-permute the [even-i | odd-i] halves back into the original column order.
        even_half = out_p[0, :n, :n_even]
        odd_half = out_p[1, :n, :n_even]   # trailing pad column (odd OUT) sliced off below
        out = jnp.stack([even_half, odd_half], axis=-1).reshape(n, 2 * n_even)
        return out[:, :out_f]

    return apply


# ---------------------------------------------------------------------------
# Pure-JAX serial reference mirroring the PyTorch forward.
# ---------------------------------------------------------------------------
def semilinear_ref(x, weight, proj_w, proj_b):
    x = x.astype(jnp.float32)
    n, feat = x.shape
    out_f = weight.shape[0]
    r = jnp.zeros((n, out_f), jnp.float32)
    i_idx = jnp.arange(out_f)[None, :]
    for k in range(feat):
        a_k = weight[None, :, k]          # (1, OUT)
        b_k = x[:, k:k + 1]               # (N, 1)
        mask = ((i_idx + k) % 2) == 0
        r = jnp.where(mask, (r + a_k) * b_k, (r + b_k) * a_k)
    proj = x @ proj_w.T + proj_b[None, :]
    return jax.nn.sigmoid(r) * proj


if __name__ == "__main__":
    key = jax.random.PRNGKey(0)

    def build_params(in_f, out_f, k):
        kw, kpw, kpb = jax.random.split(k, 3)
        weight = jax.random.normal(kw, (out_f, in_f), jnp.float32) * jnp.sqrt(2.0 / in_f)
        bound = 1.0 / jnp.sqrt(in_f)
        proj_w = jax.random.uniform(kpw, (out_f, in_f), jnp.float32, -bound, bound)
        proj_b = jax.random.uniform(kpb, (out_f,), jnp.float32, -bound, bound)
        return weight, proj_w, proj_b

    def run_case(n, in_f, out_f, k, compute_dtype, atol, rtol):
        kx, kp = jax.random.split(k)
        x = jax.random.normal(kx, (n, in_f), jnp.float32)
        weight, proj_w, proj_b = build_params(in_f, out_f, kp)
        fwd = make_semilinear(weight, proj_w, proj_b, compute_dtype=compute_dtype)
        out = jax.block_until_ready(fwd(x))
        ref = semilinear_ref(x, weight, proj_w, proj_b)
        assert out.shape == (n, out_f), (out.shape, (n, out_f))
        err = float(jnp.max(jnp.abs(out - ref)))
        assert jnp.allclose(out, ref, atol=atol, rtol=rtol), f"mismatch, max err {err}"

    k1, k2, k3, k4 = jax.random.split(key, 4)
    # Module-sized shapes; f32 MXU operands validate the algebraic reformulation exactly.
    run_case(4, 32, 16, k1, jnp.float32, 1e-3, 1e-3)
    # Same shapes with the default bf16 MXU operands (f32 accumulation) - looser tolerance.
    run_case(4, 32, 16, k2, jnp.bfloat16, 5e-2, 5e-2)
    # Row padding + even OUT split across halves.
    run_case(40, 48, 200, k3, jnp.bfloat16, 5e-2, 5e-2)
    # Odd out_features exercises the uneven even/odd half un-interleave path.
    run_case(17, 48, 33, k4, jnp.bfloat16, 5e-2, 5e-2)
    print("KERNEL_OK")
</pallas_src>

<mosaic_0001>
module attributes {stable_mosaic.version = 11 : i64} {
  func.func @_semilinear_kernel(%arg0: i32, %arg1: i32, %arg2: i32, %arg3: memref<1x8x32xf32, #tpu.memory_space<vmem>>, %arg4: memref<8x32xf32, #tpu.memory_space<vmem>>, %arg5: memref<1x32x128xf32, #tpu.memory_space<vmem>>, %arg6: memref<1x32x128xf32, #tpu.memory_space<vmem>>, %arg7: memref<1x1x128xf32, #tpu.memory_space<vmem>>, %arg8: memref<1x8x128xf32, #tpu.memory_space<vmem>>) attributes {dimension_semantics = [#tpu.dimension_semantics<parallel>, #tpu.dimension_semantics<parallel>, #tpu.dimension_semantics<parallel>], iteration_bounds = array<i64: 2, 1, 1>, scalar_prefetch = 0 : i64, scratch_operands = 0 : i64, tpu.core_type = #tpu.core_type<tc>, window_params = [{transform_indices = @transform_0, window_bounds = array<i64: 1, 8, 32>}, {transform_indices = @transform_1, window_bounds = array<i64: 8, 32>}, {transform_indices = @transform_2, window_bounds = array<i64: 1, 32, 128>}, {transform_indices = @transform_3, window_bounds = array<i64: 1, 32, 128>}, {transform_indices = @transform_4, window_bounds = array<i64: 1, 1, 128>}, {transform_indices = @transform_5, window_bounds = array<i64: 1, 8, 128>}]} {
    %c0 = arith.constant 0 : index
    %c0_0 = arith.constant 0 : index
    %c0_1 = arith.constant 0 : index
    %0 = vector.load %arg3[%c0, %c0_0, %c0_1] : memref<1x8x32xf32, #tpu.memory_space<vmem>>, vector<1x8x32xf32>
    %1 = vector.shape_cast %0 : vector<1x8x32xf32> to vector<8x32xf32>
    %c0_2 = arith.constant 0 : index
    %c0_3 = arith.constant 0 : index
    %c0_4 = arith.constant 0 : index
    %2 = vector.load %arg5[%c0_2, %c0_3, %c0_4] : memref<1x32x128xf32, #tpu.memory_space<vmem>>, vector<1x32x128xf32>
    %3 = vector.shape_cast %2 : vector<1x32x128xf32> to vector<32x128xf32>
    %cst = arith.constant dense<0.000000e+00> : vector<8x128xf32>
    %4 = tpu.matmul %1, %3, %cst {dimension_numbers = #tpu.dot_dimension_numbers<[1], [0], [0], [1], [0, 0, 1, 1], [], []>} : vector<8x32xf32>, vector<32x128xf32>, vector<8x128xf32> -> vector<8x128xf32>
    %c0_5 = arith.constant 0 : index
    %c0_6 = arith.constant 0 : index
    %5 = vector.load %arg4[%c0_5, %c0_6] : memref<8x32xf32, #tpu.memory_space<vmem>>, vector<8x32xf32>
    %c0_7 = arith.constant 0 : index
    %c0_8 = arith.constant 0 : index
    %c0_9 = arith.constant 0 : index
    %6 = vector.load %arg6[%c0_7, %c0_8, %c0_9] : memref<1x32x128xf32, #tpu.memory_space<vmem>>, vector<1x32x128xf32>
    %7 = vector.shape_cast %6 : vector<1x32x128xf32> to vector<32x128xf32>
    %cst_10 = arith.constant dense<0.000000e+00> : vector<8x128xf32>
    %8 = tpu.matmul %5, %7, %cst_10 {dimension_numbers = #tpu.dot_dimension_numbers<[1], [0], [0], [1], [0, 0, 1, 1], [], []>} : vector<8x32xf32>, vector<32x128xf32>, vector<8x128xf32> -> vector<8x128xf32>
    %c0_11 = arith.constant 0 : index
    %c0_12 = arith.constant 0 : index
    %c0_13 = arith.constant 0 : index
    %9 = vector.load %arg7[%c0_11, %c0_12, %c0_13] : memref<1x1x128xf32, #tpu.memory_space<vmem>>, vector<1x1x128xf32>
    %10 = vector.shape_cast %9 : vector<1x1x128xf32> to vector<1x128xf32>
    %11 = vector.broadcast %10 : vector<1x128xf32> to vector<8x128xf32>
    %12 = arith.addf %8, %11 : vector<8x128xf32>
    %13 = arith.negf %4 : vector<8x128xf32>
    %14 = math.exp %13 : vector<8x128xf32>
    %cst_14 = arith.constant 1.000000e+00 : f32
    %15 = vector.broadcast %cst_14 : f32 to vector<8x128xf32>
    %16 = arith.addf %15, %14 : vector<8x128xf32>
    %17 = arith.divf %15, %16 : vector<8x128xf32>
    %18 = arith.mulf %17, %12 : vector<8x128xf32>
    %c0_15 = arith.constant 0 : index
    %c0_16 = arith.constant 0 : index
    %c0_17 = arith.constant 0 : index
    %19 = vector.load %arg8[%c0_15, %c0_16, %c0_17] : memref<1x8x128xf32, #tpu.memory_space<vmem>>, vector<1x8x128xf32>
    %20 = vector.shape_cast %19 : vector<1x8x128xf32> to vector<8x128xf32>
    %21 = vector.shape_cast %18 : vector<8x128xf32> to vector<1x8x128xf32>
    tpu.vector_store %arg8[%c0_15, %c0_16, %c0_17], %21 {strides = array<i32>} : memref<1x8x128xf32, #tpu.memory_space<vmem>>, vector<1x8x128xf32>,
    return
  }
  func.func @transform_0(%arg0: i32, %arg1: i32, %arg2: i32) -> (i32, i32, i32) {
    %c0_i32 = arith.constant 0 : i32
    %c0_i32_0 = arith.constant 0 : i32
    return %arg0, %arg2, %c0_i32 : i32, i32, i32
  }
  func.func @transform_1(%arg0: i32, %arg1: i32, %arg2: i32) -> (i32, i32) {
    %c0_i32 = arith.constant 0 : i32
    %c0_i32_0 = arith.constant 0 : i32
    return %arg2, %c0_i32 : i32, i32
  }
  func.func @transform_2(%arg0: i32, %arg1: i32, %arg2: i32) -> (i32, i32, i32) {
    %c0_i32 = arith.constant 0 : i32
    %c0_i32_0 = arith.constant 0 : i32
    return %arg0, %c0_i32, %arg1 : i32, i32, i32
  }
  func.func @transform_3(%arg0: i32, %arg1: i32, %arg2: i32) -> (i32, i32, i32) {
    %c0_i32 = arith.constant 0 : i32
    %c0_i32_0 = arith.constant 0 : i32
    return %arg0, %c0_i32, %arg1 : i32, i32, i32
  }
  func.func @transform_4(%arg0: i32, %arg1: i32, %arg2: i32) -> (i32, i32, i32) {
    %c0_i32 = arith.constant 0 : i32
    %c0_i32_0 = arith.constant 0 : i32
    return %arg0, %c0_i32, %arg1 : i32, i32, i32
  }
  func.func @transform_5(%arg0: i32, %arg1: i32, %arg2: i32) -> (i32, i32, i32) {
    %c0_i32 = arith.constant 0 : i32
    return %arg0, %arg2, %arg1 : i32, i32, i32
  }
}

</mosaic_0001>

<llo_original>
// kernel: apply.1
$region0: #{apply.1}
  #allocation0 [shape = 'u32[]', space=smem, size = 0x4, offset = 0x4, fixed_abs, tag = 'smem constant byte address 0x4 - core index']
  #allocation1 [shape = 'u32[144,128]{1,0:T(1,128)}', space=vmem, size = 0x12000, scoped, tag = 'internal scratch']
  %s0 = inlined_call_operand.vmem [shape: f32[2,8,32], index: 0, kind: input, shape index: {}]
  %s1 = inlined_call_operand.vmem [shape: f32[8,32], index: 1, kind: input, shape index: {}]
  %s2 = inlined_call_operand.vmem [shape: f32[2,32,128], index: 2, kind: input, shape index: {}]
  %s3 = inlined_call_operand.vmem [shape: f32[2,32,128], index: 3, kind: input, shape index: {}]
  %s4 = inlined_call_operand.vmem [shape: f32[2,1,128], index: 4, kind: input, shape index: {}]
  %s5 = inlined_call_operand.vmem [shape: f32[2,8,128], index: 5, kind: output, shape index: {}]
  %s6 = sld [smem:[#allocation0]]
  $region53: #{apply.1} parent=0
    _
  %s8 = ssub.s32 1, %s6
  %s9 = scalar_select 0, %s8, %s6
  loop: start=0, step=1, limit=4
  $region2: #{apply.1} parent=0 // loop_pre_header
    _
  $region3: #{apply.1} parent=0 // loop_header
    %s11 = sphi 0, %s15
    %p12 = scmp.ge.s32.totalorder %s11, 4
    %s18 = sphi 0, %s37
    %s19 = sphi 0, %s33
    %s20 = sphi 0, %s29
    %s21 = sphi 0, %s18
    %s22 = sphi 0, %s19
    %s23 = sphi 0, %s20
    %s24 = sphi 0, %s21
    %s25 = sphi 0, %s22
    %s26 = sphi 0, %s23
    %s42 = sphi 0, %s44
    %s45 = sphi 0, %s42
    %s46 = sphi 0, %s45
    %s62 = sphi 0, %s46
    %s68 = sphi 0, %s70
    %s71 = sphi 0, %s68
    %s72 = sphi 0, %s71
    %s88 = sphi 0, %s72
    %s96 = sphi 0, %s98
    %s99 = sphi 0, %s96
    %s100 = sphi 0, %s99
    %s116 = sphi 0, %s100
    %s124 = sphi 0, %s126
    %s127 = sphi 0, %s124
    %s128 = sphi 0, %s127
    %s144 = sphi 0, %s128
    %s152 = sphi 0, %s154
    %s155 = sphi 0, %s152
    %s156 = sphi 0, %s155
    %s172 = sphi 0, %s156
    %s182 = sphi 0, %s184
    %s185 = sphi 0, %s182
    %s186 = sphi 0, %s185
    %s202 = sphi 0, %s186
  $region4: #{apply.1} parent=0 // loop_header_branch
    %14 = sbr.rel (%p12) target = $region8
  $region5: #{apply.1} parent=0 // loop_body
    %s16 = ssub.s32 %s11, 1
    %s17 = ssub.s32 %s11, 2
    %s27 = sadd.s32 1, %s20
    %p28 = scmp.ge.s32.totalorder %s27, 1
    %s29 = scalar_select %p28, 0, %s27
    %s30 = sadd.s32 1, %s19
    %s31 = scalar_select %p28, %s30, %s19
    %p32 = scmp.ge.s32.totalorder %s31, 1
    %s33 = scalar_select %p32, 0, %s31
    %s34 = sadd.s32 1, %s18
    %s35 = scalar_select %p32, %s34, %s18
    %p36 = scmp.ge.s32.totalorder %s35, 2
    %s37 = scalar_select %p36, 0, %s35
    %s38 = ssub.s32 %s18, %s37
    %s39 = ssub.s32 %s20, %s29
    %s40 = sor.u32 %s38, %s39
    %p41 = scmp.eq.s32.totalorder %s40, 0
    %s43 = sadd.s32 %s42, 1
    %s44 = scalar_select %p41, %s42, %s43
    %p47 = pneg %p41
    %p48 = scmp.eq.s32.totalorder %s11, 1
    %p49 = por %p47, %p48
    %p50 = scmp.ne.s32.totalorder %s42, %s45
    %p51 = scmp.eq.s32.totalorder %s11, 0
    %p52 = por %p50, %p51
    %p53 = scmp.ne.s32.totalorder %s42, %s45
    %p54 = scmp.eq.s32.totalorder %s16, 1
    %p55 = por %p53, %p54
    %p56 = scmp.ne.s32.totalorder %s45, %s46
    %p57 = scmp.eq.s32.totalorder %s16, 0
    %p58 = por %p56, %p57
    %p59 = scmp.ne.s32.totalorder %s45, %s46
    %p60 = scmp.eq.s32.totalorder %s17, 1
    %p61 = por %p59, %p60
    %p63 = scmp.ne.s32.totalorder %s46, %s62
    %p64 = scmp.eq.s32.totalorder %s17, 0
    %p65 = por %p63, %p64
    %s66 = ssub.s32 %s20, %s29
    %p67 = scmp.eq.s32.totalorder %s66, 0
    %s69 = sadd.s32 %s68, 1
    %s70 = scalar_select %p67, %s68, %s69
    %p73 = pneg %p67
    %p74 = scmp.eq.s32.totalorder %s11, 1
    %p75 = por %p73, %p74
    %p76 = scmp.ne.s32.totalorder %s68, %s71
    %p77 = scmp.eq.s32.totalorder %s11, 0
    %p78 = por %p76, %p77
    %p79 = scmp.ne.s32.totalorder %s68, %s71
    %p80 = scmp.eq.s32.totalorder %s16, 1
    %p81 = por %p79, %p80
    %p82 = scmp.ne.s32.totalorder %s71, %s72
    %p83 = scmp.eq.s32.totalorder %s16, 0
    %p84 = por %p82, %p83
    %p85 = scmp.ne.s32.totalorder %s71, %s72
    %p86 = scmp.eq.s32.totalorder %s17, 1
    %p87 = por %p85, %p86
    %p89 = scmp.ne.s32.totalorder %s72, %s88
    %p90 = scmp.eq.s32.totalorder %s17, 0
    %p91 = por %p89, %p90
    %s92 = ssub.s32 %s18, %s37
    %s93 = ssub.s32 %s19, %s33
    %s94 = sor.u32 %s92, %s93
    %p95 = scmp.eq.s32.totalorder %s94, 0
    %s97 = sadd.s32 %s96, 1
    %s98 = scalar_select %p95, %s96, %s97
    %p101 = pneg %p95
    %p102 = scmp.eq.s32.totalorder %s11, 1
    %p103 = por %p101, %p102
    %p104 = scmp.ne.s32.totalorder %s96, %s99
    %p105 = scmp.eq.s32.totalorder %s11, 0
    %p106 = por %p104, %p105
    %p107 = scmp.ne.s32.totalorder %s96, %s99
    %p108 = scmp.eq.s32.totalorder %s16, 1
    %p109 = por %p107, %p108
    %p110 = scmp.ne.s32.totalorder %s99, %s100
    %p111 = scmp.eq.s32.totalorder %s16, 0
    %p112 = por %p110, %p111
    %p113 = scmp.ne.s32.totalorder %s99, %s100
    %p114 = scmp.eq.s32.totalorder %s17, 1
    %p115 = por %p113, %p114
    %p117 = scmp.ne.s32.totalorder %s100, %s116
    %p118 = scmp.eq.s32.totalorder %s17, 0
    %p119 = por %p117, %p118
    %s120 = ssub.s32 %s18, %s37
    %s121 = ssub.s32 %s19, %s33
    %s122 = sor.u32 %s120, %s121
    %p123 = scmp.eq.s32.totalorder %s122, 0
    %s125 = sadd.s32 %s124, 1
    %s126 = scalar_select %p123, %s124, %s125
    %p129 = pneg %p123
    %p130 = scmp.eq.s32.totalorder %s11, 1
    %p131 = por %p129, %p130
    %p132 = scmp.ne.s32.totalorder %s124, %s127
    %p133 = scmp.eq.s32.totalorder %s11, 0
    %p134 = por %p132, %p133
    %p135 = scmp.ne.s32.totalorder %s124, %s127
    %p136 = scmp.eq.s32.totalorder %s16, 1
    %p137 = por %p135, %p136
    %p138 = scmp.ne.s32.totalorder %s127, %s128
    %p139 = scmp.eq.s32.totalorder %s16, 0
    %p140 = por %p138, %p139
    %p141 = scmp.ne.s32.totalorder %s127, %s128
    %p142 = scmp.eq.s32.totalorder %s17, 1
    %p143 = por %p141, %p142
    %p145 = scmp.ne.s32.totalorder %s128, %s144
    %p146 = scmp.eq.s32.totalorder %s17, 0
    %p147 = por %p145, %p146
    %s148 = ssub.s32 %s18, %s37
    %s149 = ssub.s32 %s19, %s33
    %s150 = sor.u32 %s148, %s149
    %p151 = scmp.eq.s32.totalorder %s150, 0
    %s153 = sadd.s32 %s152, 1
    %s154 = scalar_select %p151, %s152, %s153
    %p157 = pneg %p151
    %p158 = scmp.eq.s32.totalorder %s11, 1
    %p159 = por %p157, %p158
    %p160 = scmp.ne.s32.totalorder %s152, %s155
    %p161 = scmp.eq.s32.totalorder %s11, 0
    %p162 = por %p160, %p161
    %p163 = scmp.ne.s32.totalorder %s152, %s155
    %p164 = scmp.eq.s32.totalorder %s16, 1
    %p165 = por %p163, %p164
    %p166 = scmp.ne.s32.totalorder %s155, %s156
    %p167 = scmp.eq.s32.totalorder %s16, 0
    %p168 = por %p166, %p167
    %p169 = scmp.ne.s32.totalorder %s155, %s156
    %p170 = scmp.eq.s32.totalorder %s17, 1
    %p171 = por %p169, %p170
    %p173 = scmp.ne.s32.totalorder %s156, %s172
    %p174 = scmp.eq.s32.totalorder %s17, 0
    %p175 = por %p173, %p174
    %s176 = ssub.s32 %s18, %s37
    %s177 = ssub.s32 %s20, %s29
    %s178 = sor.u32 %s176, %s177
    %s179 = ssub.s32 %s19, %s33
    %s180 = sor.u32 %s178, %s179
    %p181 = scmp.eq.s32.totalorder %s180, 0
    %s183 = sadd.s32 %s182, 1
    %s184 = scalar_select %p181, %s182, %s183
    %p187 = pneg %p181
    %p188 = scmp.eq.s32.totalorder %s11, 1
    %p189 = por %p187, %p188
    %p190 = scmp.ne.s32.totalorder %s182, %s185
    %p191 = scmp.eq.s32.totalorder %s11, 0
    %p192 = por %p190, %p191
    %p193 = scmp.ne.s32.totalorder %s182, %s185
    %p194 = scmp.eq.s32.totalorder %s16, 1
    %p195 = por %p193, %p194
    %p196 = scmp.ne.s32.totalorder %s185, %s186
    %p197 = scmp.eq.s32.totalorder %s16, 0
    %p198 = por %p196, %p197
    %p199 = scmp.ne.s32.totalorder %s185, %s186
    %p200 = scmp.eq.s32.totalorder %s17, 1
    %p201 = por %p199, %p200
    %p203 = scmp.ne.s32.totalorder %s186, %s202
    %p204 = scmp.eq.s32.totalorder %s17, 0
    %p205 = por %p203, %p204
    %p206 = scmp.le.s32.totalorder 1, %s11
    %p207 = scmp.lt.s32.totalorder %s11, 3
    %p208 = pnand %p206, %p207
    %p209 = pneg %p208
    // Predicated region
    $region9: #{apply.1} parent=5 // pred_check
      _
    $region10: #{apply.1} parent=5 // pred_check_branch
      %211 = sbr.rel (%p208) target = $region12
    $region11: #{apply.1} parent=5 // pred_region
      %s212 = ssub.s32 %s11, 1
      // Predicated region
      $region13: #{apply.1} parent=11 // pred_check
        %p213 = pneg %p84
      $region14: #{apply.1} parent=11 // pred_check_branch
        %215 = sbr.rel (%p213) target = $region16
      $region15: #{apply.1} parent=11 // pred_region
        %p216 = scmp.lt.s32.totalorder %s23, 0
        %s217 = scalar_select %p216, %s23, 0
        %s218 = smul.addr %s217, 8
        %s219 = scalar_lea.vmem %s1, %s218
      $region16: #{apply.1} parent=11 // pred_fallthru
        _
    $region12: #{apply.1} parent=5 // pred_fallthru
      _
    %p220 = scmp.lt.s32.totalorder %s11, 2
    // Predicated region
    $region17: #{apply.1} parent=5 // pred_check
      %p221 = pneg %p220
    $region18: #{apply.1} parent=5 // pred_check_branch
      %223 = sbr.rel (%p221) target = $region20
    $region19: #{apply.1} parent=5 // pred_region
      // Predicated region
      $region21: #{apply.1} parent=19 // pred_check
        %p224 = pneg %p52
      $region22: #{apply.1} parent=19 // pred_check_branch
        %226 = sbr.rel (%p224) target = $region24
      $region23: #{apply.1} parent=19 // pred_region
        %p227 = scmp.lt.s32.totalorder %s18, 1
        %s228 = scalar_select %p227, %s18, 1
        %p229 = scmp.lt.s32.totalorder %s20, 0
        %s230 = scalar_select %p229, %s20, 0
        %s231 = sadd.s32 %s230, %s228
        %s232 = smul.addr %s231, 8
        %s233 = scalar_lea.vmem %s0, %s232
      $region24: #{apply.1} parent=19 // pred_fallthru
        _
      // Predicated region
      $region25: #{apply.1} parent=19 // pred_check
        %p234 = pneg %p106
      $region26: #{apply.1} parent=19 // pred_check_branch
        %236 = sbr.rel (%p234) target = $region28
      $region27: #{apply.1} parent=19 // pred_region
        %p237 = scmp.lt.s32.totalorder %s18, 1
        %s238 = scalar_select %p237, %s18, 1
        %p239 = scmp.lt.s32.totalorder %s19, 0
        %s240 = scalar_select %p239, %s19, 0
        %s241 = smul.addr %s238, 4
        %s242 = sadd.s32 %s240, %s241
        %s243 = smul.addr %s242, 8
        %s244 = scalar_lea.vmem %s2, %s243
      $region28: #{apply.1} parent=19 // pred_fallthru
        _
      // Predicated region
      $region29: #{apply.1} parent=19 // pred_check
        %p245 = pneg %p134
      $region30: #{apply.1} parent=19 // pred_check_branch
        %247 = sbr.rel (%p245) target = $region32
      $region31: #{apply.1} parent=19 // pred_region
        %p248 = scmp.lt.s32.totalorder %s18, 1
        %s249 = scalar_select %p248, %s18, 1
        %p250 = scmp.lt.s32.totalorder %s19, 0
        %s251 = scalar_select %p250, %s19, 0
        %s252 = smul.addr %s249, 4
        %s253 = sadd.s32 %s251, %s252
        %s254 = smul.addr %s253, 8
        %s255 = scalar_lea.vmem %s3, %s254
      $region32: #{apply.1} parent=19 // pred_fallthru
        _
      // Predicated region
      $region33: #{apply.1} parent=19 // pred_check
        %p256 = pneg %p162
      $region34: #{apply.1} parent=19 // pred_check_branch
        %258 = sbr.rel (%p256) target = $region36
      $region35: #{apply.1} parent=19 // pred_region
        %p259 = scmp.lt.s32.totalorder %s18, 1
        %s260 = scalar_select %p259, %s18, 1
        %p261 = scmp.lt.s32.totalorder %s19, 0
        %s262 = scalar_select %p261, %s19, 0
        %s263 = sadd.s32 %s262, %s260
        %s264 = scalar_lea.vmem %s4, %s263
      $region36: #{apply.1} parent=19 // pred_fallthru
        _
    $region20: #{apply.1} parent=5 // pred_fallthru
      _
    %p265 = scmp.le.s32.totalorder 1, %s11
    %p266 = scmp.lt.s32.totalorder %s11, 3
    %p267 = pnand %p265, %p266
    %p268 = pneg %p267
    // Predicated region
    $region37: #{apply.1} parent=5 // pred_check
      _
    $region38: #{apply.1} parent=5 // pred_check_branch
      %270 = sbr.rel (%p267) target = $region40
    $region39: #{apply.1} parent=5 // pred_region
      %s271 = ssub.s32 %s11, 1
      %p272 = scmp.lt.s32.totalorder %s21, 1
      %s273 = scalar_select %p272, %s21, 1
      %p274 = scmp.lt.s32.totalorder %s23, 0
      %s275 = scalar_select %p274, %s23, 0
      %s276 = sadd.s32 %s275, %s273
      %s277 = smul.addr %s276, 8
      %s278 = scalar_lea.vmem %s0, %s277
      %p279 = pneg %p58
      %p280 = pneg %p55
      %p281 = scmp.lt.s32.totalorder %s23, 0
      %s282 = scalar_select %p281, %s23, 0
      %s283 = smul.addr %s282, 8
      %s284 = scalar_lea.vmem %s1, %s283
      %p285 = pneg %p84
      %p286 = pneg %p81
      %p287 = scmp.lt.s32.totalorder %s21, 1
      %s288 = scalar_select %p287, %s21, 1
      %p289 = scmp.lt.s32.totalorder %s22, 0
      %s290 = scalar_select %p289, %s22, 0
      %s291 = smul.addr %s288, 4
      %s292 = sadd.s32 %s290, %s291
      %s293 = smul.addr %s292, 8
      %s294 = scalar_lea.vmem %s2, %s293
      %p295 = pneg %p112
      %p296 = pneg %p109
      %p297 = scmp.lt.s32.totalorder %s21, 1
      %s298 = scalar_select %p297, %s21, 1
      %p299 = scmp.lt.s32.totalorder %s22, 0
      %s300 = scalar_select %p299, %s22, 0
      %s301 = smul.addr %s298, 4
      %s302 = sadd.s32 %s300, %s301
      %s303 = smul.addr %s302, 8
      %s304 = scalar_lea.vmem %s3, %s303
      %p305 = pneg %p140
      %p306 = pneg %p137
      %p307 = scmp.lt.s32.totalorder %s21, 1
      %s308 = scalar_select %p307, %s21, 1
      %p309 = scmp.lt.s32.totalorder %s22, 0
      %s310 = scalar_select %p309, %s22, 0
      %s311 = sadd.s32 %s310, %s308
      %s312 = scalar_lea.vmem %s4, %s311
      %p313 = pneg %p168
      %p314 = pneg %p165
      %p315 = pneg %p198
      %p316 = pneg %p195
      %p317 = scmp.lt.s32.totalorder %s21, 1
      %s318 = scalar_select %p317, %s21, 1
      %p319 = scmp.lt.s32.totalorder %s23, 0
      %s320 = scalar_select %p319, %s23, 0
      %p321 = scmp.lt.s32.totalorder %s22, 0
      %s322 = scalar_select %p321, %s22, 0
      %s323 = sadd.s32 %s322, %s320
      %s324 = sadd.s32 %s323, %s318
      %s325 = smul.addr %s324, 8
      %s326 = scalar_lea.vmem %s5, %s325
      %p327 = scmp.lt.s32.totalorder %s21, 1
      %s328 = scalar_select %p327, %s21, 1
      %p329 = scmp.lt.s32.totalorder %s23, 0
      %s330 = scalar_select %p329, %s23, 0
      %s331 = sadd.s32 %s330, %s328
      %s332 = smul.addr %s331, 8
      %s333 = scalar_lea.vmem %s0, %s332
      %p334 = scmp.lt.s32.totalorder %s23, 0
      %s335 = scalar_select %p334, %s23, 0
      %s336 = smul.addr %s335, 8
      %s337 = scalar_lea.vmem %s1, %s336
      %p338 = scmp.lt.s32.totalorder %s21, 1
      %s339 = scalar_select %p338, %s21, 1
      %p340 = scmp.lt.s32.totalorder %s22, 0
      %s341 = scalar_select %p340, %s22, 0
      %s342 = smul.addr %s339, 4
      %s343 = sadd.s32 %s341, %s342
      %s344 = smul.addr %s343, 8
      %s345 = scalar_lea.vmem %s2, %s344
      %p346 = scmp.lt.s32.totalorder %s21, 1
      %s347 = scalar_select %p346, %s21, 1
      %p348 = scmp.lt.s32.totalorder %s22, 0
      %s349 = scalar_select %p348, %s22, 0
      %s350 = smul.addr %s347, 4
      %s351 = sadd.s32 %s349, %s350
      %s352 = smul.addr %s351, 8
      %s353 = scalar_lea.vmem %s3, %s352
      %p354 = scmp.lt.s32.totalorder %s21, 1
      %s355 = scalar_select %p354, %s21, 1
      %p356 = scmp.lt.s32.totalorder %s22, 0
      %s357 = scalar_select %p356, %s22, 0
      %s358 = sadd.s32 %s357, %s355
      %s359 = scalar_lea.vmem %s4, %s358
      %p360 = scmp.lt.s32.totalorder %s21, 1
      %s361 = scalar_select %p360, %s21, 1
      %p362 = scmp.lt.s32.totalorder %s23, 0
      %s363 = scalar_select %p362, %s23, 0
      %p364 = scmp.lt.s32.totalorder %s22, 0
      %s365 = scalar_select %p364, %s22, 0
      %s366 = sadd.s32 %s365, %s363
      %s367 = sadd.s32 %s366, %s361
      %s368 = smul.addr %s367, 8
      %s369 = scalar_lea.vmem %s5, %s368
      %v370 = vld [vmem:[%s333] sm:$0xff]
      %v371 = vld [vmem:[%s345] sm:$0xff]
      %v372 = vld [vmem:[%s345 + $0x8] sm:$0xff]
      %v373 = vld [vmem:[%s345 + $0x10] sm:$0xff]
      %v374 = vld [vmem:[%s345 + $0x18] sm:$0xff]
      %vm375 = vcmask 261120
      %v377 = vsel %vm375, %v370, 0
      %379 = vmatprep.subr.mxu0 0.0
      %380 = vmatpush1.msra.mxu0 0.0
      %381 = vmatprep.subr.mxu0 0.0
      %382 = vmatpush1.msra.mxu0 0.0
      %383 = vmatprep.subr.mxu0 0.0
      %384 = vmatpush1.msra.mxu0 0.0
      %385 = vmatprep.subr.mxu0 0.0
      %386 = vmatpush1.msra.mxu0 0.0
      %387 = vmatprep.subr.mxu0 0.0
      %388 = vmatpush1.msra.mxu0 0.0
      %389 = vmatprep.subr.mxu0 0.0
      %390 = vmatpush1.msra.mxu0 0.0
      %391 = vmatprep.subr.mxu0 0.0
      %392 = vmatpush1.msra.mxu0 0.0
      %393 = vmatprep.subr.mxu0 0.0
      %394 = vmatpush1.msra.mxu0 0.0
      %395 = vmatprep.subr.mxu0 0.0
      %396 = vmatpush1.msra.mxu0 0.0
      %397 = vmatprep.subr.mxu0 0.0
      %398 = vmatpush1.msra.mxu0 0.0
      %399 = vmatprep.subr.mxu0 0.0
      %400 = vmatpush1.msra.mxu0 0.0
      %401 = vmatprep.subr.mxu0 0.0
      %402 = vmatpush1.msra.mxu0 0.0
      %403 = vmatprep.subr.mxu0 0.0
      %404 = vmatpush1.msra.mxu0 %v374
      %405 = vmatprep.subr.mxu0 0.0
      %406 = vmatpush1.msra.mxu0 %v373
      %407 = vmatprep.subr.mxu0 0.0
      %408 = vmatpush1.msra.mxu0 %v372
      %409 = vmatprep.subr.mxu0 0.0
      %410 = vmatpush1.msra.mxu0 %v371
      %411 = vmatprep.subr.mxu0 0.0
      %412 = vmatpush2.msra.mxu0 0.0
      %413 = vmatprep.subr.mxu0 0.0
      %414 = vmatpush2.msra.mxu0 0.0
      %415 = vmatprep.subr.mxu0 0.0
      %416 = vmatpush2.msra.mxu0 0.0
      %417 = vmatprep.subr.mxu0 0.0
      %418 = vmatpush2.msra.mxu0 0.0
      %419 = vmatprep.subr.mxu0 0.0
      %420 = vmatpush2.msra.mxu0 0.0
      %421 = vmatprep.subr.mxu0 0.0
      %422 = vmatpush2.msra.mxu0 0.0
      %423 = vmatprep.subr.mxu0 0.0
      %424 = vmatpush2.msra.mxu0 0.0
      %425 = vmatprep.subr.mxu0 0.0
      %426 = vmatpush2.msra.mxu0 0.0
      %427 = vmatprep.subr.mxu0 0.0
      %428 = vmatpush2.msra.mxu0 0.0
      %429 = vmatprep.subr.mxu0 0.0
      %430 = vmatpush2.msra.mxu0 0.0
      %431 = vmatprep.subr.mxu0 0.0
      %432 = vmatpush2.msra.mxu0 0.0
      %433 = vmatprep.subr.mxu0 0.0
      %434 = vmatpush2.msra.mxu0 0.0
      %435 = vmatprep.subr.mxu0 0.0
      %436 = vmatpush2.msra.mxu0 0.0
      %437 = vmatprep.subr.mxu0 0.0
      %438 = vmatpush2.msra.mxu0 0.0
      %439 = vmatprep.subr.mxu0 0.0
      %440 = vmatpush2.msra.mxu0 0.0
      %441 = vmatprep.subr.mxu0 0.0
      %442 = vmatpush2.msra.mxu0 0.0
      %443 = vmatprep.mubr.f32.mxu0 0.0
      %444 = vmatmul.mubr.f32.gmra.mxu0 %v377
      %v445 = vpop.f32.mrf.mxu0
      %v446 = vadd.f32 0.0, %v445
      %v447 = vpop.f32.mrf.mxu0
      %448 = vdwg.mxu0
      %v449 = vld [vmem:[%s337] sm:$0xff]
      %v450 = vld [vmem:[%s353] sm:$0xff]
      %v451 = vld [vmem:[%s353 + $0x8] sm:$0xff]
      %v452 = vld [vmem:[%s353 + $0x10] sm:$0xff]
      %v453 = vld [vmem:[%s353 + $0x18] sm:$0xff]
      %v454 = vld [vmem:[%s359] sm:$0x1]
      %v456 = vlaneseq
      %v457 = vshrl.u32 %v456, 7
      %v458 = vsub.s32 0, %v457
      %v459 = vrot.slane %v454, %v458
      %v462 = vsel %vm375, %v449, 0
      %464 = vmatprep.subr.mxu0 0.0
      %465 = vmatpush1.msra.mxu0 0.0
      %466 = vmatprep.subr.mxu0 0.0
      %467 = vmatpush1.msra.mxu0 0.0
      %468 = vmatprep.subr.mxu0 0.0
      %469 = vmatpush1.msra.mxu0 0.0
      %470 = vmatprep.subr.mxu0 0.0
      %471 = vmatpush1.msra.mxu0 0.0
      %472 = vmatprep.subr.mxu0 0.0
      %473 = vmatpush1.msra.mxu0 0.0
      %474 = vmatprep.subr.mxu0 0.0
      %475 = vmatpush1.msra.mxu0 0.0
      %476 = vmatprep.subr.mxu0 0.0
      %477 = vmatpush1.msra.mxu0 0.0
      %478 = vmatprep.subr.mxu0 0.0
      %479 = vmatpush1.msra.mxu0 0.0
      %480 = vmatprep.subr.mxu0 0.0
      %481 = vmatpush1.msra.mxu0 0.0
      %482 = vmatprep.subr.mxu0 0.0
      %483 = vmatpush1.msra.mxu0 0.0
      %484 = vmatprep.subr.mxu0 0.0
      %485 = vmatpush1.msra.mxu0 0.0
      %486 = vmatprep.subr.mxu0 0.0
      %487 = vmatpush1.msra.mxu0 0.0
      %488 = vmatprep.subr.mxu0 0.0
      %489 = vmatpush1.msra.mxu0 %v453
      %490 = vmatprep.subr.mxu0 0.0
      %491 = vmatpush1.msra.mxu0 %v452
      %492 = vmatprep.subr.mxu0 0.0
      %493 = vmatpush1.msra.mxu0 %v451
      %494 = vmatprep.subr.mxu0 0.0
      %495 = vmatpush1.msra.mxu0 %v450
      %496 = vmatprep.subr.mxu0 0.0
      %497 = vmatpush2.msra.mxu0 0.0
      %498 = vmatprep.subr.mxu0 0.0
      %499 = vmatpush2.msra.mxu0 0.0
      %500 = vmatprep.subr.mxu0 0.0
      %501 = vmatpush2.msra.mxu0 0.0
      %502 = vmatprep.subr.mxu0 0.0
      %503 = vmatpush2.msra.mxu0 0.0
      %504 = vmatprep.subr.mxu0 0.0
      %505 = vmatpush2.msra.mxu0 0.0
      %506 = vmatprep.subr.mxu0 0.0
      %507 = vmatpush2.msra.mxu0 0.0
      %508 = vmatprep.subr.mxu0 0.0
      %509 = vmatpush2.msra.mxu0 0.0
      %510 = vmatprep.subr.mxu0 0.0
      %511 = vmatpush2.msra.mxu0 0.0
      %512 = vmatprep.subr.mxu0 0.0
      %513 = vmatpush2.msra.mxu0 0.0
      %514 = vmatprep.subr.mxu0 0.0
      %515 = vmatpush2.msra.mxu0 0.0
      %516 = vmatprep.subr.mxu0 0.0
      %517 = vmatpush2.msra.mxu0 0.0
      %518 = vmatprep.subr.mxu0 0.0
      %519 = vmatpush2.msra.mxu0 0.0
      %520 = vmatprep.subr.mxu0 0.0
      %521 = vmatpush2.msra.mxu0 0.0
      %522 = vmatprep.subr.mxu0 0.0
      %523 = vmatpush2.msra.mxu0 0.0
      %524 = vmatprep.subr.mxu0 0.0
      %525 = vmatpush2.msra.mxu0 0.0
      %526 = vmatprep.subr.mxu0 0.0
      %527 = vmatpush2.msra.mxu0 0.0
      %528 = vmatprep.mubr.f32.mxu0 0.0
      %529 = vmatmul.mubr.f32.gmra.mxu0 %v462
      %v530 = vpop.f32.mrf.mxu0
      %v531 = vadd.f32 %v459, %v530
      %v532 = vpop.f32.mrf.mxu0
      %533 = vdwg.mxu0
      %v534 = vxor.u32 %v446, 2147483648
      %v535 = vmul.f32 %v534, 1.442695
      %v536 = vpow.pop %v535
      %v537 = vadd.f32 %v536, 1.0
      %v538 = vrcp.pop %v537
      %v539 = vmul.f32 1.0, %v538
      %v540 = vmul.f32 %v539, %v531
      %541 = vst [vmem:[%s369] sm:$0xff] %v540
      %p542 = scmp.lt.s32.totalorder %s21, 1
      %s543 = scalar_select %p542, %s21, 1
      %p544 = scmp.lt.s32.totalorder %s23, 0
      %s545 = scalar_select %p544, %s23, 0
      %p546 = scmp.lt.s32.totalorder %s22, 0
      %s547 = scalar_select %p546, %s22, 0
      %s548 = sadd.s32 %s547, %s545
      %s549 = sadd.s32 %s548, %s543
      %s550 = smul.addr %s549, 8
      %s551 = scalar_lea.vmem %s5, %s550
      // Predicated region
      $region41: #{apply.1} parent=39 // pred_check
        %p552 = pneg %p195
      $region42: #{apply.1} parent=39 // pred_check_branch
        %554 = sbr.rel (%p552) target = $region44
      $region43: #{apply.1} parent=39 // pred_region
        _
      $region44: #{apply.1} parent=39 // pred_fallthru
        _
    $region40: #{apply.1} parent=5 // pred_fallthru
      _
    %p555 = scmp.le.s32.totalorder 2, %s11
    // Predicated region
    $region45: #{apply.1} parent=5 // pred_check
      %p556 = pneg %p555
    $region46: #{apply.1} parent=5 // pred_check_branch
      %558 = sbr.rel (%p556) target = $region48
    $region47: #{apply.1} parent=5 // pred_region
      %s559 = ssub.s32 %s11, 2
      // Predicated region
      $region49: #{apply.1} parent=47 // pred_check
        %p560 = pneg %p201
      $region50: #{apply.1} parent=47 // pred_check_branch
        %562 = sbr.rel (%p560) target = $region52
      $region51: #{apply.1} parent=47 // pred_region
        %p563 = scmp.lt.s32.totalorder %s24, 1
        %s564 = scalar_select %p563, %s24, 1
        %p565 = scmp.lt.s32.totalorder %s26, 0
        %s566 = scalar_select %p565, %s26, 0
        %p567 = scmp.lt.s32.totalorder %s25, 0
        %s568 = scalar_select %p567, %s25, 0
        %s569 = sadd.s32 %s568, %s566
        %s570 = sadd.s32 %s569, %s564
        %s571 = smul.addr %s570, 8
        %s572 = scalar_lea.vmem %s5, %s571
      $region52: #{apply.1} parent=47 // pred_fallthru
        _
    $region48: #{apply.1} parent=5 // pred_fallthru
      _
  $region6: #{apply.1} parent=0 // loop_footer
    %s15 = sadd.s32 1, %s11
  $region7: #{apply.1} parent=0 // loop_footer_branch
    %10 = sbr.rel target = $region3
  $region8: #{apply.1} parent=0 // loop_exit
    _

</llo_original>
